<compile_context>
chip_gen: v5e
topology: v5e:2x2
jax: 0.10.0
libtpu: 0.0.40
codegen_flags: <defaults>
</compile_context>

<pallas_src>
import jax
import jax.numpy as jnp
from jax.experimental import pallas as pl
from jax.experimental.pallas import tpu as pltpu

_LANES = 512             # lane-dense last dim (multiple of 128)
_MAX_BLOCK_ROWS = 2048   # 2048 x 512 f32 = 4 MiB per block per buffer
_MIN_GRID_STEPS = 4      # >= 4 steps -> pipelined DMA, >= 2 steps per v7x TC
_XLA_FALLBACK_ELEMS = 1 << 18  # below ~1 MiB of f32, let XLA fuse the cast


def _cast_kernel(x_ref, o_ref):
    # Elementwise truncating cast f32 -> s32 on the whole VMEM tile (VPU op).
    o_ref[...] = x_ref[...].astype(jnp.int32)


def _choose_block_rows(rows: int) -> int:
    """Pick a sublane-aligned block height giving >= _MIN_GRID_STEPS steps."""
    if rows <= 8:
        # Full-extent single block (valid per the "equals full dim" rule);
        # perf is irrelevant at this size.
        return rows
    target = -(-rows // _MIN_GRID_STEPS)      # cdiv(rows, 4)
    block_rows = -(-target // 8) * 8          # round up to a multiple of 8
    return max(8, min(block_rows, _MAX_BLOCK_ROWS))


def _cast_pallas(x: jax.Array) -> jax.Array:
    """Lane-dense, tiled Pallas cast of an arbitrary-shape f32 array to s32."""
    orig_shape = x.shape
    total = int(x.size)
    if total == 0:
        return jnp.zeros(orig_shape, jnp.int32)

    flat = x.reshape(-1)
    main = (total // _LANES) * _LANES   # 512-aligned prefix handled by Pallas
    parts = []

    if main > 0:
        rows = main // _LANES
        block_rows = _choose_block_rows(rows)
        grid = (pl.cdiv(rows, block_rows),)   # partial last block is masked
        x2d = (flat if main == total else flat[:main]).reshape(rows, _LANES)
        out2d = pl.pallas_call(
            _cast_kernel,
            out_shape=jax.ShapeDtypeStruct((rows, _LANES), jnp.int32),
            grid=grid,
            in_specs=[pl.BlockSpec((block_rows, _LANES), lambda i: (i, 0))],
            out_specs=pl.BlockSpec((block_rows, _LANES), lambda i: (i, 0)),
            compiler_params=pltpu.CompilerParams(
                dimension_semantics=("parallel",),
                vmem_limit_bytes=32 << 20,
            ),
        )(x2d)
        parts.append(out2d.reshape(-1))

    if main < total:
        # Ragged tail (< 512 elems): cheaper to cast directly than to pad the
        # whole array and re-slice (each of which is a full extra HBM pass).
        parts.append(flat[main:].astype(jnp.int32))

    out = parts[0] if len(parts) == 1 else jnp.concatenate(parts)
    return out.reshape(orig_shape)


def cast_f32_to_s32(x: jax.Array, *, force_pallas: bool = False) -> jax.Array:
    """net_Cast forward: float32 tensor -> int32 tensor (truncate toward 0).

    For very small tensors XLA's fused convert is strictly faster than a
    pallas_call; dispatch to it unless `force_pallas` is set.
    """
    if (not force_pallas) and x.size < _XLA_FALLBACK_ELEMS:
        return x.astype(jnp.int32)
    return _cast_pallas(x)


if __name__ == "__main__":
    key = jax.random.PRNGKey(0)

    # 1) The module's nominal rank-4 input (NCHW, small). Force the Pallas
    #    path so the kernel itself is exercised; values include negatives and
    #    fractional parts to check truncation toward zero.
    x_small = jax.random.normal(key, (2, 4, 16, 16), dtype=jnp.float32) * 10.0
    out_small = jax.block_until_ready(cast_f32_to_s32(x_small, force_pallas=True))
    ref_small = x_small.astype(jnp.int32)
    assert out_small.dtype == jnp.int32
    assert out_small.shape == x_small.shape
    assert bool(jnp.all(out_small == ref_small))

    # 2) A larger rank-4 input that exercises the multi-block pipelined path
    #    (4096 rows -> block_rows=1024, grid=(4,)).
    k2 = jax.random.fold_in(key, 1)
    x_big = jax.random.normal(k2, (8, 32, 64, 128), dtype=jnp.float32) * 100.0
    out_big = jax.block_until_ready(cast_f32_to_s32(x_big, force_pallas=True))
    assert out_big.dtype == jnp.int32
    assert bool(jnp.all(out_big == x_big.astype(jnp.int32)))

    # 3) An awkward shape that exercises the aligned-prefix + ragged-tail
    #    split (7905 elems: 15 full rows via Pallas, 225-elem tail via astype).
    k3 = jax.random.fold_in(key, 2)
    x_odd = jax.random.normal(k3, (3, 5, 17, 31), dtype=jnp.float32) * 50.0
    out_odd = jax.block_until_ready(cast_f32_to_s32(x_odd, force_pallas=True))
    assert out_odd.dtype == jnp.int32
    assert bool(jnp.all(out_odd == x_odd.astype(jnp.int32)))

    print("KERNEL_OK")
</pallas_src>

<mosaic_0001>
module attributes {stable_mosaic.version = 11 : i64} {
  func.func @_cast_kernel(%arg0: i32, %arg1: memref<4x512xf32, #tpu.memory_space<vmem>>, %arg2: memref<4x512xi32, #tpu.memory_space<vmem>>) attributes {dimension_semantics = [#tpu.dimension_semantics<parallel>], iteration_bounds = array<i64: 1>, scalar_prefetch = 0 : i64, scratch_operands = 0 : i64, tpu.core_type = #tpu.core_type<tc>, window_params = [{transform_indices = @transform_0, window_bounds = array<i64: 4, 512>}, {transform_indices = @transform_1, window_bounds = array<i64: 4, 512>}]} {
    %c0 = arith.constant 0 : index
    %c0_0 = arith.constant 0 : index
    %0 = vector.load %arg1[%c0, %c0_0] : memref<4x512xf32, #tpu.memory_space<vmem>>, vector<4x512xf32>
    %1 = arith.fptosi %0 : vector<4x512xf32> to vector<4x512xi32>
    %c0_1 = arith.constant 0 : index
    %c0_2 = arith.constant 0 : index
    %2 = vector.load %arg2[%c0_1, %c0_2] : memref<4x512xi32, #tpu.memory_space<vmem>>, vector<4x512xi32>
    tpu.vector_store %arg2[%c0_1, %c0_2], %1 {strides = array<i32>} : memref<4x512xi32, #tpu.memory_space<vmem>>, vector<4x512xi32>,
    return
  }
  func.func @transform_0(%arg0: i32) -> (i32, i32) {
    %c0_i32 = arith.constant 0 : i32
    %c0_i32_0 = arith.constant 0 : i32
    return %arg0, %c0_i32 : i32, i32
  }
  func.func @transform_1(%arg0: i32) -> (i32, i32) {
    %c0_i32 = arith.constant 0 : i32
    %c0_i32_0 = arith.constant 0 : i32
    return %arg0, %c0_i32 : i32, i32
  }
}

</mosaic_0001>

<llo_original>
// kernel: tpu_custom_call.1
$region0: #{tpu_custom_call.1}
  #allocation0 [shape = 'u32[]', space=smem, size = 0x4, offset = 0x4, fixed_abs, tag = 'smem constant byte address 0x4 - core index']
  #allocation1 [shape = 'u32[72,128]{1,0:T(1,128)}', space=vmem, size = 0x9000, scoped, tag = 'internal scratch']
  %s0 = inlined_call_operand.hbm [shape: f32[4,512], index: 0, kind: input, shape index: {}]
  %s1 = inlined_call_operand.hbm [shape: s32[4,512], index: 1, kind: output, shape index: {}]
  %s2 = sld [smem:[#allocation0]]
  $region18: #{tpu_custom_call.1} parent=0
    _
  %s4 = ssub.s32 1, %s2
  %s5 = scalar_select 0, %s4, %s2
  $region1: #{tpu_custom_call.1} parent=0
    #allocation2 [shape = 'u8[8192]{0}', space=vmem, size = 0x2000, scoped, tag = 'input window, operand 0, single buffered']
    #allocation3 [shape = 's32[1]{0}', space=sflag, size = 0x4, scoped, tag = 'scoped memory for tpu_custom_call.1']
    #allocation4 [shape = 's32[1]{0}', space=sflag, size = 0x4, scoped, tag = 'scoped memory for tpu_custom_call.1']
    #allocation5 [shape = 'u8[8192]{0}', space=vmem, size = 0x2000, scoped, tag = 'output window, operand 0, single buffered']
    %6 = vsyncpa [#allocation3], 0
    %7 = vsyncpa [#allocation4], 0
    // Predicated region
    $region2: #{tpu_custom_call.1} parent=1 // pred_check
      _
    $region3: #{tpu_custom_call.1} parent=1 // pred_check_branch
      %9 = sbr.rel (0) target = $region5
    $region4: #{tpu_custom_call.1} parent=1 // pred_region
      %11 = vsyncadd [#allocation3], 0
      %s13 = sshll.u32 %s0, 4
      %s14 = int_to_ptr.hbm [resolvable:$true] %s13
      %s15 = sshll.u32 [#allocation2], 4
      %s16 = int_to_ptr.vmem [resolvable:$true] %s15
      %18 = dma.hbm_to_vmem [thread:$0]  %s14, 256, %s16, [#allocation3]
    $region5: #{tpu_custom_call.1} parent=1 // pred_fallthru
      _
    // Predicated region
    $region6: #{tpu_custom_call.1} parent=1 // pred_check
      _
    $region7: #{tpu_custom_call.1} parent=1 // pred_check_branch
      %20 = sbr.rel (0) target = $region9
    $region8: #{tpu_custom_call.1} parent=1 // pred_region
      %22 = dma.done [#allocation3], 256
    $region9: #{tpu_custom_call.1} parent=1 // pred_fallthru
      _
    %v23 = vld [vmem:[#allocation2] sm:$0xff]
    %v24 = vld [vmem:[#allocation2 + $0x8] sm:$0xff]
    %v25 = vcvt.f32.s32.to.zero.pseudo %v23
    %v26 = vcvt.f32.s32.to.zero.pseudo %v24
    %27 = vst [vmem:[#allocation5] sm:$0xff] %v25
    %28 = vst [vmem:[#allocation5 + $0x8] sm:$0xff] %v26
    // Predicated region
    $region10: #{tpu_custom_call.1} parent=1 // pred_check
      _
    $region11: #{tpu_custom_call.1} parent=1 // pred_check_branch
      %30 = sbr.rel (0) target = $region13
    $region12: #{tpu_custom_call.1} parent=1 // pred_region
      %32 = vsyncadd [#allocation4], 0
      %s34 = sshll.u32 [#allocation5], 4
      %s35 = int_to_ptr.vmem [resolvable:$true] %s34
      %s36 = sshll.u32 %s1, 4
      %s37 = int_to_ptr.hbm [resolvable:$true] %s36
      %39 = dma.vmem_to_hbm [thread:$0]  %s35, 256, %s37, [#allocation4]
    $region13: #{tpu_custom_call.1} parent=1 // pred_fallthru
      _
    // Predicated region
    $region14: #{tpu_custom_call.1} parent=1 // pred_check
      _
    $region15: #{tpu_custom_call.1} parent=1 // pred_check_branch
      %41 = sbr.rel (0) target = $region17
    $region16: #{tpu_custom_call.1} parent=1 // pred_region
      %43 = dma.done [#allocation4], 256
    $region17: #{tpu_custom_call.1} parent=1 // pred_fallthru
      _
    %44 = vsyncpa [#allocation3], 1
    %45 = vsyncpa [#allocation4], 1

</llo_original>
